<compile_context>
chip_gen: v7x
topology: tpu7x:2x2x1
jax: 0.10.0
libtpu: 0.0.40
codegen_flags: <defaults>
</compile_context>

<pallas_src>
import jax
import jax.numpy as jnp
from jax import lax
from jax.experimental import pallas as pl
from jax.experimental.pallas import tpu as pltpu


def self_attention_pallas(x_nchw, wq, bq, wk, bk, wv, bv, gamma, *, tj=None):
    """x_nchw: (B, C, W, H) float32. Returns (B, C, W, H) float32."""
    B, C, W, H = x_nchw.shape
    N = W * H
    C8 = wq.shape[0]
    assert C8 >= 1, "in_channels must be >= 8 for the //8 projection"
    assert C % 8 == 0 and N % 128 == 0, (
        "this kernel assumes C % 8 == 0 and (W*H) % 128 == 0")

    # Pad the q/k channel count to a multiple of 16 so slices of the bf16 fused
    # qkv scratch stay sublane-tile aligned (bf16 tile = 16 rows).  Padded rows
    # have zero weight/bias and therefore contribute nothing to q.k.
    C8p = -(-C8 // 16) * 16
    Ctot = 2 * C8p + C

    # ---- key-axis tile size -------------------------------------------------
    if tj is None:
        if N <= 512:
            tj = 128                       # small maps: still exercise >=2 steps
        else:
            tj = 512
            # keep the (TJ, N) f32 attention block <= ~8 MiB so the working set
            # stays comfortable even under v7x's 64 MiB VMEM.
            while tj * N * 4 > (8 << 20) and tj > 128:
                tj //= 2
    while N % tj:
        tj //= 2
    tj = max(tj, 128)
    n_j = N // tj

    f32 = jnp.float32
    bf16 = jnp.bfloat16

    # ---- fused (and padded) projection weights ------------------------------
    w_cat = jnp.zeros((Ctot, C), f32)
    w_cat = w_cat.at[:C8, :].set(wq.astype(f32))
    w_cat = w_cat.at[C8p:C8p + C8, :].set(wk.astype(f32))
    w_cat = w_cat.at[2 * C8p:, :].set(wv.astype(f32))
    b_cat = jnp.zeros((Ctot,), f32)
    b_cat = b_cat.at[:C8].set(bq.astype(f32))
    b_cat = b_cat.at[C8p:C8p + C8].set(bk.astype(f32))
    b_cat = b_cat.at[2 * C8p:].set(bv.astype(f32))

    x_flat = x_nchw.reshape(B, C, N).astype(f32)       # NCHW flatten: no transpose
    w_bf = w_cat.astype(bf16)                          # MXU inputs in bf16
    b_col = b_cat.reshape(Ctot, 1)                     # f32 bias column
    gamma_arr = jnp.asarray(gamma, f32).reshape((1,))  # scalar -> SMEM

    # ---- VMEM budget (working set + headroom, clamped to v7x physical) ------
    vmem_est = 4 * (2 * C * N        # x block (double buffered)
                    + 2 * C * N      # output block (doubles as f32 accumulator)
                    + Ctot * N       # f32 projection result before bf16 store
                    + 3 * tj * N     # softmax temporaries (s, e, p)
                    + 2 * Ctot * 128)  # bias column (lane-padded, double buffered)
    vmem_est += 2 * (Ctot * N                 # bf16 fused qkv scratch
                     + 2 * Ctot * C           # bf16 weight (double buffered)
                     + C8p * N + (C8p + C) * tj + tj * N)  # bf16 operand copies
    vmem_limit = int(min(max(vmem_est * 3 // 2, 16 << 20), 64 << 20))

    # ---- kernel --------------------------------------------------------------
    def kernel(x_ref, w_ref, b_ref, gamma_ref, o_ref, qkv_ref):
        j = pl.program_id(1)

        @pl.when(j == 0)
        def _init():
            # One fused projection per batch element: (Ctot, C) @ (C, N).
            xb = x_ref[0].astype(bf16)
            qkv = jnp.dot(w_ref[...], xb, preferred_element_type=jnp.float32)
            qkv_ref[...] = (qkv + b_ref[...]).astype(bf16)
            o_ref[...] = jnp.zeros_like(o_ref)          # output block = accumulator

        off = pl.multiple_of(j * tj, tj)
        q = qkv_ref[0:C8p, :]                            # (C8p, N)  bf16
        kt = qkv_ref[C8p:2 * C8p, pl.ds(off, tj)]        # (C8p, tj) bf16
        vt = qkv_ref[2 * C8p:Ctot, pl.ds(off, tj)]       # (C,   tj) bf16

        # s[j_local, i] = sum_c k[c, j] * q[c, i]  -> transposed attention block
        s = lax.dot_general(kt, q, (((0,), (0,)), ((), ())),
                            preferred_element_type=jnp.float32)           # (tj, N)
        # softmax over the *query* axis i (axis 1 here) == torch dim=1; f32 math.
        s = s - jnp.max(s, axis=1, keepdims=True)
        e = jnp.exp(s)
        p = e * pl.reciprocal(jnp.sum(e, axis=1, keepdims=True), approx=True)

        # out[c, m] += sum_{j in tile} v[c, j] * p[j, m]   (f32 accumulate)
        o_ref[0] += jnp.dot(vt, p.astype(bf16),
                            preferred_element_type=jnp.float32)           # (C, N)

        @pl.when(j == pl.num_programs(1) - 1)
        def _finish():
            o_ref[0] = (x_ref[0] + gamma_ref[0] * o_ref[0]).astype(o_ref.dtype)

    out_flat = pl.pallas_call(
        kernel,
        out_shape=jax.ShapeDtypeStruct((B, C, N), f32),
        grid_spec=pltpu.PrefetchScalarGridSpec(
            num_scalar_prefetch=0,
            grid=(B, n_j),
            in_specs=[
                pl.BlockSpec((1, C, N), lambda b, j: (b, 0, 0)),    # x (per batch)
                pl.BlockSpec((Ctot, C), lambda b, j: (0, 0)),       # fused W (bf16)
                pl.BlockSpec((Ctot, 1), lambda b, j: (0, 0)),       # fused bias (f32)
                pl.BlockSpec(memory_space=pltpu.MemorySpace.SMEM),  # gamma scalar
            ],
            out_specs=pl.BlockSpec((1, C, N), lambda b, j: (b, 0, 0)),
            scratch_shapes=[
                pltpu.VMEM((Ctot, N), bf16),   # fused q/k/v per batch (bf16)
            ],
        ),
        compiler_params=pltpu.CompilerParams(
            dimension_semantics=("parallel", "arbitrary"),
            vmem_limit_bytes=vmem_limit,
        ),
    )(x_flat, w_bf, b_col, gamma_arr)

    return out_flat.reshape(B, C, W, H)


def self_attention_reference(x_nchw, wq, bq, wk, bk, wv, bv, gamma):
    """Pure-JAX f32 reference mirroring the PyTorch forward pass."""
    B, C, W, H = x_nchw.shape
    N = W * H

    def conv1x1(x, w, b):  # x (B,C,W,H), w (Co,Ci), b (Co,)
        return jnp.einsum('bcwh,oc->bowh', x, w) + b[None, :, None, None]

    q = conv1x1(x_nchw, wq, bq).reshape(B, -1, N).transpose(0, 2, 1)   # (B, N, C8)
    k = conv1x1(x_nchw, wk, bk).reshape(B, -1, N)                      # (B, C8, N)
    attn = jnp.einsum('bnc,bcm->bnm', q, k)                            # (B, N, N)
    attn = jax.nn.softmax(attn, axis=1)                                # torch dim=1
    v = conv1x1(x_nchw, wv, bv).reshape(B, -1, N)                      # (B, C, N)
    out = jnp.einsum('bcn,bmn->bcm', v, attn)                          # (B, C, N)
    return gamma * out.reshape(B, C, W, H) + x_nchw


if __name__ == "__main__":
    # Small, deterministic synthetic setup (C must be >= 8 for the //8 conv).
    B, C, W, H = 2, 32, 16, 16
    C8 = C // 8

    key = jax.random.PRNGKey(0)
    k_x, k_wq, k_bq, k_wk, k_bk, k_wv, k_bv = jax.random.split(key, 7)

    x = jax.random.normal(k_x, (B, C, W, H), dtype=jnp.float32)
    wq = 0.1 * jax.random.normal(k_wq, (C8, C), dtype=jnp.float32)
    bq = 0.1 * jax.random.normal(k_bq, (C8,), dtype=jnp.float32)
    wk = 0.1 * jax.random.normal(k_wk, (C8, C), dtype=jnp.float32)
    bk = 0.1 * jax.random.normal(k_bk, (C8,), dtype=jnp.float32)
    wv = 0.1 * jax.random.normal(k_wv, (C, C), dtype=jnp.float32)
    bv = 0.1 * jax.random.normal(k_bv, (C,), dtype=jnp.float32)
    # gamma is zero-initialized in the module; use a nonzero deterministic value
    # so the attention path is actually exercised.
    gamma = jnp.float32(0.5)

    y = self_attention_pallas(x, wq, bq, wk, bk, wv, bv, gamma)
    y = jax.block_until_ready(y)

    y_ref = self_attention_reference(x, wq, bq, wk, bk, wv, bv, gamma)
    err = float(jnp.max(jnp.abs(y - y_ref)))
    assert y.shape == (B, C, W, H)
    # bf16 MXU inputs + approx reciprocal -> slightly looser tolerance than f32.
    assert jnp.allclose(y, y_ref, rtol=3e-2, atol=3e-2), err

    print("KERNEL_OK")
</pallas_src>

<mosaic_0001>
module attributes {stable_mosaic.version = 11 : i64} {
  func.func @kernel(%arg0: i32, %arg1: i32, %arg2: memref<1x32x256xf32, #tpu.memory_space<vmem>>, %arg3: memref<64x32xbf16, #tpu.memory_space<vmem>>, %arg4: memref<64x1xf32, #tpu.memory_space<vmem>>, %arg5: memref<1xf32, #tpu.memory_space<smem>>, %arg6: memref<1x32x256xf32, #tpu.memory_space<vmem>>, %arg7: memref<64x256xbf16, #tpu.memory_space<vmem>>) attributes {dimension_semantics = [#tpu.dimension_semantics<parallel>, #tpu.dimension_semantics<arbitrary>], iteration_bounds = array<i64: 2, 2>, scalar_prefetch = 0 : i64, scratch_operands = 1 : i64, tpu.core_type = #tpu.core_type<tc>, window_params = [{transform_indices = @transform_0, window_bounds = array<i64: 1, 32, 256>}, {pipeline_mode = #tpu.pipeline_mode<synchronous>, transform_indices = @transform_1, window_bounds = array<i64: 64, 32>}, {pipeline_mode = #tpu.pipeline_mode<synchronous>, transform_indices = @transform_2, window_bounds = array<i64: 64, 1>}, {transform_indices = @transform_3, window_bounds = array<i64: 1>}, {transform_indices = @transform_4, window_bounds = array<i64: 1, 32, 256>}]} {
    %c0_i32 = arith.constant 0 : i32
    %0 = arith.cmpi eq, %arg1, %c0_i32 : i32
    %1 = arith.extui %0 : i1 to i32
    %c0_i32_0 = arith.constant 0 : i32
    %2 = arith.cmpi ne, %1, %c0_i32_0 : i32
    scf.if %2 {
      %c0_12 = arith.constant 0 : index
      %c0_13 = arith.constant 0 : index
      %c0_14 = arith.constant 0 : index
      %32 = vector.load %arg2[%c0_12, %c0_13, %c0_14] : memref<1x32x256xf32, #tpu.memory_space<vmem>>, vector<1x32x256xf32>
      %33 = vector.shape_cast %32 : vector<1x32x256xf32> to vector<32x256xf32>
      %34 = arith.truncf %33 : vector<32x256xf32> to vector<32x256xbf16>
      %c0_15 = arith.constant 0 : index
      %c0_16 = arith.constant 0 : index
      %35 = vector.load %arg3[%c0_15, %c0_16] : memref<64x32xbf16, #tpu.memory_space<vmem>>, vector<64x32xbf16>
      %cst_17 = arith.constant dense<0.000000e+00> : vector<64x256xf32>
      %36 = tpu.matmul %35, %34, %cst_17 {dimension_numbers = #tpu.dot_dimension_numbers<[1], [0], [0], [1], [0, 0, 1, 1], [], []>} : vector<64x32xbf16>, vector<32x256xbf16>, vector<64x256xf32> -> vector<64x256xf32>
      %c0_18 = arith.constant 0 : index
      %c0_19 = arith.constant 0 : index
      %37 = vector.load %arg4[%c0_18, %c0_19] : memref<64x1xf32, #tpu.memory_space<vmem>>, vector<64x1xf32>
      %38 = vector.broadcast %37 : vector<64x1xf32> to vector<64x256xf32>
      %39 = arith.addf %36, %38 : vector<64x256xf32>
      %40 = arith.truncf %39 : vector<64x256xf32> to vector<64x256xbf16>
      %c0_20 = arith.constant 0 : index
      %c0_21 = arith.constant 0 : index
      %41 = vector.load %arg7[%c0_20, %c0_21] : memref<64x256xbf16, #tpu.memory_space<vmem>>, vector<64x256xbf16>
      tpu.vector_store %arg7[%c0_20, %c0_21], %40 {strides = array<i32>} : memref<64x256xbf16, #tpu.memory_space<vmem>>, vector<64x256xbf16>,
      %cst_22 = arith.constant 0.000000e+00 : f32
      %42 = vector.broadcast %cst_22 : f32 to vector<1x32x256xf32>
      %c0_23 = arith.constant 0 : index
      %c0_24 = arith.constant 0 : index
      %c0_25 = arith.constant 0 : index
      %43 = vector.load %arg6[%c0_23, %c0_24, %c0_25] : memref<1x32x256xf32, #tpu.memory_space<vmem>>, vector<1x32x256xf32>
      tpu.vector_store %arg6[%c0_23, %c0_24, %c0_25], %42 {strides = array<i32>} : memref<1x32x256xf32, #tpu.memory_space<vmem>>, vector<1x32x256xf32>,
    } else {
    }
    %c128_i32 = arith.constant 128 : i32
    %3 = arith.muli %arg1, %c128_i32 : i32
    %4 = tpu.assume_multiple %3, 128 : i32
    %c0 = arith.constant 0 : index
    %c0_1 = arith.constant 0 : index
    %5 = vector.load %arg7[%c0, %c0_1] : memref<64x256xbf16, #tpu.memory_space<vmem>>, vector<16x256xbf16>
    %c16 = arith.constant 16 : index
    %6 = arith.index_cast %4 : i32 to index
    %7 = vector.load %arg7[%c16, %6] : memref<64x256xbf16, #tpu.memory_space<vmem>>, vector<16x128xbf16>
    %c32 = arith.constant 32 : index
    %8 = arith.index_cast %4 : i32 to index
    %9 = vector.load %arg7[%c32, %8] : memref<64x256xbf16, #tpu.memory_space<vmem>>, vector<32x128xbf16>
    %cst = arith.constant dense<0.000000e+00> : vector<128x256xf32>
    %10 = tpu.matmul %7, %5, %cst {dimension_numbers = #tpu.dot_dimension_numbers<[0], [0], [1], [1], [0, 1, 1, 1], [], []>} : vector<16x128xbf16>, vector<16x256xbf16>, vector<128x256xf32> -> vector<128x256xf32>
    %cst_2 = arith.constant dense<0xFF800000> : vector<128xf32>
    %11 = vector.multi_reduction <maximumf>, %10, %cst_2 [1] : vector<128x256xf32> to vector<128xf32>
    %12 = vector.shape_cast %11 : vector<128xf32> to vector<128x1xf32>
    %13 = vector.broadcast %12 : vector<128x1xf32> to vector<128x256xf32>
    %14 = arith.subf %10, %13 : vector<128x256xf32>
    %15 = math.exp %14 : vector<128x256xf32>
    %cst_3 = arith.constant dense<0.000000e+00> : vector<128xf32>
    %16 = vector.multi_reduction <add>, %15, %cst_3 [1] : vector<128x256xf32> to vector<128xf32>
    %17 = vector.shape_cast %16 : vector<128xf32> to vector<128x1xf32>
    %18 = tpu.reciprocal %17 {approx = true} : vector<128x1xf32> -> vector<128x1xf32>
    %19 = vector.broadcast %18 : vector<128x1xf32> to vector<128x256xf32>
    %20 = arith.mulf %15, %19 : vector<128x256xf32>
    %c0_4 = arith.constant 0 : index
    %c0_5 = arith.constant 0 : index
    %c0_6 = arith.constant 0 : index
    %21 = vector.load %arg6[%c0_4, %c0_5, %c0_6] : memref<1x32x256xf32, #tpu.memory_space<vmem>>, vector<1x32x256xf32>
    %22 = vector.shape_cast %21 : vector<1x32x256xf32> to vector<32x256xf32>
    %23 = arith.truncf %20 : vector<128x256xf32> to vector<128x256xbf16>
    %cst_7 = arith.constant dense<0.000000e+00> : vector<32x256xf32>
    %24 = tpu.matmul %9, %23, %cst_7 {dimension_numbers = #tpu.dot_dimension_numbers<[1], [0], [0], [1], [0, 0, 1, 1], [], []>} : vector<32x128xbf16>, vector<128x256xbf16>, vector<32x256xf32> -> vector<32x256xf32>
    %25 = arith.addf %22, %24 : vector<32x256xf32>
    %c0_8 = arith.constant 0 : index
    %c0_9 = arith.constant 0 : index
    %c0_10 = arith.constant 0 : index
    %26 = vector.load %arg6[%c0_8, %c0_9, %c0_10] : memref<1x32x256xf32, #tpu.memory_space<vmem>>, vector<1x32x256xf32>
    %27 = vector.shape_cast %26 : vector<1x32x256xf32> to vector<32x256xf32>
    %28 = vector.shape_cast %25 : vector<32x256xf32> to vector<1x32x256xf32>
    tpu.vector_store %arg6[%c0_8, %c0_9, %c0_10], %28 {strides = array<i32>} : memref<1x32x256xf32, #tpu.memory_space<vmem>>, vector<1x32x256xf32>,
    %c1_i32 = arith.constant 1 : i32
    %29 = arith.cmpi eq, %arg1, %c1_i32 : i32
    %30 = arith.extui %29 : i1 to i32
    %c0_i32_11 = arith.constant 0 : i32
    %31 = arith.cmpi ne, %30, %c0_i32_11 : i32
    scf.if %31 {
      %c0_12 = arith.constant 0 : index
      %c0_13 = arith.constant 0 : index
      %c0_14 = arith.constant 0 : index
      %32 = vector.load %arg2[%c0_12, %c0_13, %c0_14] : memref<1x32x256xf32, #tpu.memory_space<vmem>>, vector<1x32x256xf32>
      %33 = vector.shape_cast %32 : vector<1x32x256xf32> to vector<32x256xf32>
      %c0_15 = arith.constant 0 : index
      %34 = memref.load %arg5[%c0_15] : memref<1xf32, #tpu.memory_space<smem>>
      %c0_16 = arith.constant 0 : index
      %c0_17 = arith.constant 0 : index
      %c0_18 = arith.constant 0 : index
      %35 = vector.load %arg6[%c0_16, %c0_17, %c0_18] : memref<1x32x256xf32, #tpu.memory_space<vmem>>, vector<1x32x256xf32>
      %36 = vector.shape_cast %35 : vector<1x32x256xf32> to vector<32x256xf32>
      %37 = vector.broadcast %34 : f32 to vector<32x256xf32>
      %38 = arith.mulf %37, %36 : vector<32x256xf32>
      %39 = arith.addf %33, %38 : vector<32x256xf32>
      %c0_19 = arith.constant 0 : index
      %c0_20 = arith.constant 0 : index
      %c0_21 = arith.constant 0 : index
      %40 = vector.load %arg6[%c0_19, %c0_20, %c0_21] : memref<1x32x256xf32, #tpu.memory_space<vmem>>, vector<1x32x256xf32>
      %41 = vector.shape_cast %40 : vector<1x32x256xf32> to vector<32x256xf32>
      %42 = vector.shape_cast %39 : vector<32x256xf32> to vector<1x32x256xf32>
      tpu.vector_store %arg6[%c0_19, %c0_20, %c0_21], %42 {strides = array<i32>} : memref<1x32x256xf32, #tpu.memory_space<vmem>>, vector<1x32x256xf32>,
    } else {
    }
    return
  }
  func.func @transform_0(%arg0: i32, %arg1: i32) -> (i32, i32, i32) {
    %c0_i32 = arith.constant 0 : i32
    %c0_i32_0 = arith.constant 0 : i32
    %c0_i32_1 = arith.constant 0 : i32
    return %arg0, %c0_i32, %c0_i32_0 : i32, i32, i32
  }
  func.func @transform_1(%arg0: i32, %arg1: i32) -> (i32, i32) {
    %c0_i32 = arith.constant 0 : i32
    %c0_i32_0 = arith.constant 0 : i32
    %c0_i32_1 = arith.constant 0 : i32
    return %c0_i32, %c0_i32_0 : i32, i32
  }
  func.func @transform_2(%arg0: i32, %arg1: i32) -> (i32, i32) {
    %c0_i32 = arith.constant 0 : i32
    %c0_i32_0 = arith.constant 0 : i32
    %c0_i32_1 = arith.constant 0 : i32
    return %c0_i32, %c0_i32_0 : i32, i32
  }
  func.func @transform_3(%arg0: i32, %arg1: i32) -> i32 {
    %c0_i32 = arith.constant 0 : i32
    %c0_i32_0 = arith.constant 0 : i32
    return %c0_i32 : i32
  }
  func.func @transform_4(%arg0: i32, %arg1: i32) -> (i32, i32, i32) {
    %c0_i32 = arith.constant 0 : i32
    %c0_i32_0 = arith.constant 0 : i32
    %c0_i32_1 = arith.constant 0 : i32
    return %arg0, %c0_i32, %c0_i32_0 : i32, i32, i32
  }
}

</mosaic_0001>

<llo_original>
// kernel: tpu_custom_call.1
$region0: #{tpu_custom_call.1}
  #allocation0 [shape = 'u32[]', space=smem, size = 0x4, offset = 0x4, fixed_abs, tag = 'smem constant byte address 0x4 - core index']
  #allocation1 [shape = 'u32[144,128]{1,0:T(1,128)}', space=vmem, size = 0x12000, scoped, tag = 'internal scratch']
  #allocation2 [shape = 'bf16[64,256]{1,0:T(16,128)(2,1)}', space=vmem, size = 0x8000, scoped, tag = 'scratch operand']
  #allocation3 [shape = 'f32[1]{0:T(128)S(6)}', space=smem, size = 0x200, scoped, tag = 'scoped memory for tpu_custom_call.1']
  %s0 = inlined_call_operand.hbm [shape: f32[2,32,256], index: 0, kind: input, shape index: {}]
  %s1 = inlined_call_operand.vmem [shape: bf16[64,32], index: 1, kind: input, shape index: {}]
  %s2 = inlined_call_operand.vmem [shape: f32[64,1], index: 2, kind: input, shape index: {}]
  %s3 = inlined_call_operand.<no memory space> [shape: f32[1], index: 3, kind: input, shape index: {}]
  %s4 = inlined_call_operand.hbm [shape: f32[2,32,256], index: 4, kind: output, shape index: {}]
  %s5 = sld [smem:[#allocation0]]
  $region61: #{tpu_custom_call.1} parent=0
    _
  %s7 = ssub.s32 1, %s5
  %s8 = scalar_select 0, %s7, %s5
  %9 = sst [smem:[#allocation3]] %s3
  $region1: #{tpu_custom_call.1} parent=0
    #allocation4 [shape = 'u8[65536]{0}', space=vmem, size = 0x10000, scoped, tag = 'input window, operand 0']
    #allocation5 [shape = 's32[2]{0}', space=sflag, size = 0x8, scoped, tag = 'scoped memory for tpu_custom_call.1']
    #allocation6 [shape = 's32[2]{0}', space=sflag, size = 0x8, scoped, tag = 'scoped memory for tpu_custom_call.1']
    #allocation7 [shape = 'u8[65536]{0}', space=vmem, size = 0x10000, scoped, tag = 'output window, operand 0']
    %10 = vsyncpa [#allocation5], 0
    %s11 = scalar_lea.sflag [#allocation5], 1
    %12 = vsyncpa %s11, 0
    %13 = vsyncpa [#allocation6], 0
    %s14 = scalar_lea.sflag [#allocation6], 1
    %15 = vsyncpa %s14, 0
    loop: start=0, step=1, limit=6
    $region2: #{tpu_custom_call.1} parent=1 // loop_pre_header
      _
    $region3: #{tpu_custom_call.1} parent=1 // loop_header
      %s17 = sphi 0, %s21
      %p18 = scmp.ge.s32.totalorder %s17, 6
      %s24 = sphi 0, %s36
      %s25 = sphi 0, %s32
      %s26 = sphi 0, %s24
      %s27 = sphi 0, %s25
      %s28 = sphi 0, %s26
      %s29 = sphi 0, %s27
      %s39 = sphi 0, %s41
      %s42 = sphi 0, %s39
      %s43 = sphi 0, %s42
      %s59 = sphi 0, %s43
      %s63 = sphi 0, %s63
      %s65 = sphi 0, %s63
      %s66 = sphi 0, %s65
      %s80 = sphi 0, %s66
      %s84 = sphi 0, %s84
      %s86 = sphi 0, %s84
      %s87 = sphi 0, %s86
      %s101 = sphi 0, %s87
      %s105 = sphi 0, %s105
      %s107 = sphi 0, %s105
      %s108 = sphi 0, %s107
      %s122 = sphi 0, %s108
      %s128 = sphi 0, %s130
      %s131 = sphi 0, %s128
      %s132 = sphi 0, %s131
      %s148 = sphi 0, %s132
    $region4: #{tpu_custom_call.1} parent=1 // loop_header_branch
      %20 = sbr.rel (%p18) target = $region8
    $region5: #{tpu_custom_call.1} parent=1 // loop_body
      %s22 = ssub.s32 %s17, 1
      %s23 = ssub.s32 %s17, 2
      %s30 = sadd.s32 1, %s25
      %p31 = scmp.ge.s32.totalorder %s30, 2
      %s32 = scalar_select %p31, 0, %s30
      %s33 = sadd.s32 1, %s24
      %s34 = scalar_select %p31, %s33, %s24
      %p35 = scmp.ge.s32.totalorder %s34, 2
      %s36 = scalar_select %p35, 0, %s34
      %s37 = ssub.s32 %s24, %s36
      %p38 = scmp.eq.s32.totalorder %s37, 0
      %s40 = sadd.s32 %s39, 1
      %s41 = scalar_select %p38, %s39, %s40
      %p44 = pneg %p38
      %p45 = scmp.eq.s32.totalorder %s17, 3
      %p46 = por %p44, %p45
      %p47 = scmp.ne.s32.totalorder %s39, %s42
      %p48 = scmp.eq.s32.totalorder %s17, 0
      %p49 = por %p47, %p48
      %p50 = scmp.ne.s32.totalorder %s39, %s42
      %p51 = scmp.eq.s32.totalorder %s22, 3
      %p52 = por %p50, %p51
      %p53 = scmp.ne.s32.totalorder %s42, %s43
      %p54 = scmp.eq.s32.totalorder %s22, 0
      %p55 = por %p53, %p54
      %p56 = scmp.ne.s32.totalorder %s42, %s43
      %p57 = scmp.eq.s32.totalorder %s23, 3
      %p58 = por %p56, %p57
      %p60 = scmp.ne.s32.totalorder %s43, %s59
      %p61 = scmp.eq.s32.totalorder %s23, 0
      %p62 = por %p60, %p61
      %s64 = sadd.s32 %s63, 1
      %p67 = scmp.eq.s32.totalorder %s17, 3
      %p68 = scmp.ne.s32.totalorder %s63, %s65
      %p69 = scmp.eq.s32.totalorder %s17, 0
      %p70 = por %p68, %p69
      %p71 = scmp.ne.s32.totalorder %s63, %s65
      %p72 = scmp.eq.s32.totalorder %s22, 3
      %p73 = por %p71, %p72
      %p74 = scmp.ne.s32.totalorder %s65, %s66
      %p75 = scmp.eq.s32.totalorder %s22, 0
      %p76 = por %p74, %p75
      %p77 = scmp.ne.s32.totalorder %s65, %s66
      %p78 = scmp.eq.s32.totalorder %s23, 3
      %p79 = por %p77, %p78
      %p81 = scmp.ne.s32.totalorder %s66, %s80
      %p82 = scmp.eq.s32.totalorder %s23, 0
      %p83 = por %p81, %p82
      %s85 = sadd.s32 %s84, 1
      %p88 = scmp.eq.s32.totalorder %s17, 3
      %p89 = scmp.ne.s32.totalorder %s84, %s86
      %p90 = scmp.eq.s32.totalorder %s17, 0
      %p91 = por %p89, %p90
      %p92 = scmp.ne.s32.totalorder %s84, %s86
      %p93 = scmp.eq.s32.totalorder %s22, 3
      %p94 = por %p92, %p93
      %p95 = scmp.ne.s32.totalorder %s86, %s87
      %p96 = scmp.eq.s32.totalorder %s22, 0
      %p97 = por %p95, %p96
      %p98 = scmp.ne.s32.totalorder %s86, %s87
      %p99 = scmp.eq.s32.totalorder %s23, 3
      %p100 = por %p98, %p99
      %p102 = scmp.ne.s32.totalorder %s87, %s101
      %p103 = scmp.eq.s32.totalorder %s23, 0
      %p104 = por %p102, %p103
      %s106 = sadd.s32 %s105, 1
      %p109 = scmp.eq.s32.totalorder %s17, 3
      %p110 = scmp.ne.s32.totalorder %s105, %s107
      %p111 = scmp.eq.s32.totalorder %s17, 0
      %p112 = por %p110, %p111
      %p113 = scmp.ne.s32.totalorder %s105, %s107
      %p114 = scmp.eq.s32.totalorder %s22, 3
      %p115 = por %p113, %p114
      %p116 = scmp.ne.s32.totalorder %s107, %s108
      %p117 = scmp.eq.s32.totalorder %s22, 0
      %p118 = por %p116, %p117
      %p119 = scmp.ne.s32.totalorder %s107, %s108
      %p120 = scmp.eq.s32.totalorder %s23, 3
      %p121 = por %p119, %p120
      %p123 = scmp.ne.s32.totalorder %s108, %s122
      %p124 = scmp.eq.s32.totalorder %s23, 0
      %p125 = por %p123, %p124
      %s126 = ssub.s32 %s24, %s36
      %p127 = scmp.eq.s32.totalorder %s126, 0
      %s129 = sadd.s32 %s128, 1
      %s130 = scalar_select %p127, %s128, %s129
      %p133 = pneg %p127
      %p134 = scmp.eq.s32.totalorder %s17, 3
      %p135 = por %p133, %p134
      %p136 = scmp.ne.s32.totalorder %s128, %s131
      %p137 = scmp.eq.s32.totalorder %s17, 0
      %p138 = por %p136, %p137
      %p139 = scmp.ne.s32.totalorder %s128, %s131
      %p140 = scmp.eq.s32.totalorder %s22, 3
      %p141 = por %p139, %p140
      %p142 = scmp.ne.s32.totalorder %s131, %s132
      %p143 = scmp.eq.s32.totalorder %s22, 0
      %p144 = por %p142, %p143
      %p145 = scmp.ne.s32.totalorder %s131, %s132
      %p146 = scmp.eq.s32.totalorder %s23, 3
      %p147 = por %p145, %p146
      %p149 = scmp.ne.s32.totalorder %s132, %s148
      %p150 = scmp.eq.s32.totalorder %s23, 0
      %p151 = por %p149, %p150
      %p152 = scmp.le.s32.totalorder 1, %s17
      %p153 = scmp.lt.s32.totalorder %s17, 5
      %p154 = pnand %p152, %p153
      %p155 = pneg %p154
      // Predicated region
      $region9: #{tpu_custom_call.1} parent=5 // pred_check
        _
      $region10: #{tpu_custom_call.1} parent=5 // pred_check_branch
        %157 = sbr.rel (%p154) target = $region12
      $region11: #{tpu_custom_call.1} parent=5 // pred_region
        %s158 = ssub.s32 %s17, 1
        // Predicated region
        $region13: #{tpu_custom_call.1} parent=11 // pred_check
          %p159 = pneg %p76
        $region14: #{tpu_custom_call.1} parent=11 // pred_check_branch
          %161 = sbr.rel (%p159) target = $region16
        $region15: #{tpu_custom_call.1} parent=11 // pred_region
          _
        $region16: #{tpu_custom_call.1} parent=11 // pred_fallthru
          _
        // Predicated region
        $region17: #{tpu_custom_call.1} parent=11 // pred_check
          %p162 = pneg %p97
        $region18: #{tpu_custom_call.1} parent=11 // pred_check_branch
          %164 = sbr.rel (%p162) target = $region20
        $region19: #{tpu_custom_call.1} parent=11 // pred_region
          _
        $region20: #{tpu_custom_call.1} parent=11 // pred_fallthru
          _
        // Predicated region
        $region21: #{tpu_custom_call.1} parent=11 // pred_check
          %p165 = pneg %p118
        $region22: #{tpu_custom_call.1} parent=11 // pred_check_branch
          %167 = sbr.rel (%p165) target = $region24
        $region23: #{tpu_custom_call.1} parent=11 // pred_region
          _
        $region24: #{tpu_custom_call.1} parent=11 // pred_fallthru
          _
      $region12: #{tpu_custom_call.1} parent=5 // pred_fallthru
        _
      %p168 = scmp.lt.s32.totalorder %s17, 4
      // Predicated region
      $region25: #{tpu_custom_call.1} parent=5 // pred_check
        %p169 = pneg %p168
      $region26: #{tpu_custom_call.1} parent=5 // pred_check_branch
        %171 = sbr.rel (%p169) target = $region28
      $region27: #{tpu_custom_call.1} parent=5 // pred_region
        // Predicated region
        $region29: #{tpu_custom_call.1} parent=27 // pred_check
          %p172 = pneg %p49
        $region30: #{tpu_custom_call.1} parent=27 // pred_check_branch
          %174 = sbr.rel (%p172) target = $region32
        $region31: #{tpu_custom_call.1} parent=27 // pred_region
          %s175 = sand.u32 %s39, 1
          %s176 = scalar_lea.sflag [#allocation5], %s175
          %s177 = sand.u32 %s39, 1
          %s178 = smul.addr %s177, 64
          %s179 = scalar_lea.vmem [#allocation4], %s178
          %s181 = ssub.s32 1024, 1024
          %182 = vsyncadd %s176, %s181
          %s183 = smul.addr %s24, 8
          %s184 = smul.addr %s183, 128
          %s185 = scalar_lea.hbm %s0, %s184
          %s186 = sshll.u32 %s179, 4
          %s187 = int_to_ptr.vmem [resolvable:$true] %s186
          %192 = dma.hbm_to_vmem [thread:$0]  %s185, 1024, %s187, %s176, 256, 256, 16
        $region32: #{tpu_custom_call.1} parent=27 // pred_fallthru
          _
      $region28: #{tpu_custom_call.1} parent=5 // pred_fallthru
        _
      %p193 = scmp.le.s32.totalorder 1, %s17
      %p194 = scmp.lt.s32.totalorder %s17, 5
      %p195 = pnand %p193, %p194
      %p196 = pneg %p195
      // Predicated region
      $region33: #{tpu_custom_call.1} parent=5 // pred_check
        _
      $region34: #{tpu_custom_call.1} parent=5 // pred_check_branch
        %198 = sbr.rel (%p195) target = $region36
      $region35: #{tpu_custom_call.1} parent=5 // pred_region
        %s199 = ssub.s32 %s17, 1
        %s200 = sand.u32 %s42, 1
        %s201 = scalar_lea.sflag [#allocation5], %s200
        %s202 = sand.u32 %s42, 1
        %s203 = smul.addr %s202, 64
        %s204 = scalar_lea.vmem [#allocation4], %s203
        // Predicated region
        $region37: #{tpu_custom_call.1} parent=35 // pred_check
          %p205 = pneg %p55
        $region38: #{tpu_custom_call.1} parent=35 // pred_check_branch
          %207 = sbr.rel (%p205) target = $region40
        $region39: #{tpu_custom_call.1} parent=35 // pred_region
          %208 = dma.done %s201, 1024
        $region40: #{tpu_custom_call.1} parent=35 // pred_fallthru
          _
        %s209 = sand.u32 %s42, 1
        %s210 = scalar_lea.sflag [#allocation5], %s209
        %s211 = sand.u32 %s42, 1
        %s212 = smul.addr %s211, 64
        %s213 = scalar_lea.vmem [#allocation4], %s212
        %p214 = pneg %p55
        %p215 = pneg %p52
        %p216 = pneg %p76
        %p217 = pneg %p73
        %p218 = pneg %p97
        %p219 = pneg %p94
        %p220 = pneg %p118
        %p221 = pneg %p115
        %p222 = pneg %p144
        %p223 = pneg %p141
        %s224 = sand.u32 %s131, 1
        %s225 = scalar_lea.sflag [#allocation6], %s224
        %s226 = sand.u32 %s131, 1
        %s227 = smul.addr %s226, 64
        %s228 = scalar_lea.vmem [#allocation7], %s227
        %p230 = scmp.eq.s32.totalorder %s27, 0
        // Predicated region
        $region41: #{tpu_custom_call.1} parent=35 // pred_check
          %p231 = pneg %p230
        $region42: #{tpu_custom_call.1} parent=35 // pred_check_branch
          %233 = sbr.rel (%p231) target = $region44
        $region43: #{tpu_custom_call.1} parent=35 // pred_region
          %v234 = vld [vmem:[%s204] sm:$0xff]
          %v235 = vld [vmem:[%s204 + $0x8] sm:$0xff]
          %v236 = vld [vmem:[%s204 + $0x10] sm:$0xff]
          %v237 = vld [vmem:[%s204 + $0x18] sm:$0xff]
          %v238 = vld [vmem:[%s204 + $0x20] sm:$0xff]
          %v239 = vld [vmem:[%s204 + $0x28] sm:$0xff]
          %v240 = vld [vmem:[%s204 + $0x30] sm:$0xff]
          %v241 = vld [vmem:[%s204 + $0x38] sm:$0xff]
          %v242 = vpack.c.bf16 %v236, %v234
          %v243 = vpack.c.bf16 %v237, %v235
          %v244 = vpack.c.bf16 %v240, %v238
          %v245 = vpack.c.bf16 %v241, %v239
          %v246 = vld [vmem:[%s1] sm:$0xf]
          %v247 = vld [vmem:[%s1 + $0x4] sm:$0xf]
          %v248 = vld [vmem:[%s1 + $0x8] sm:$0xf]
          %v249 = vld [vmem:[%s1 + $0xc] sm:$0xf]
          %v250 = vld [vmem:[%s1 + $0x10] sm:$0xf]
          %v251 = vld [vmem:[%s1 + $0x14] sm:$0xf]
          %v252 = vld [vmem:[%s1 + $0x18] sm:$0xf]
          %v253 = vld [vmem:[%s1 + $0x1c] sm:$0xf]
          %v254 = vld [vmem:[%s2] sm:$0xff]
          %v255 = vld [vmem:[%s2 + $0x8] sm:$0xff]
          %v256 = vld [vmem:[%s2 + $0x10] sm:$0xff]
          %v257 = vld [vmem:[%s2 + $0x18] sm:$0xff]
          %v258 = vld [vmem:[%s2 + $0x20] sm:$0xff]
          %v259 = vld [vmem:[%s2 + $0x28] sm:$0xff]
          %v260 = vld [vmem:[%s2 + $0x30] sm:$0xff]
          %v261 = vld [vmem:[%s2 + $0x38] sm:$0xff]
          %263 = vset.pattern.permute.xlu0 0
          %264 = vperm.xlu0 %263, %v254
          %v265 = vpop.permute.xlu0 %264
          %268 = vset.pattern.permute.xlu0 0
          %269 = vperm.xlu0 %268, %v255
          %v270 = vpop.permute.xlu0 %269
          %273 = vset.pattern.permute.xlu0 0
          %274 = vperm.xlu0 %273, %v256
          %v275 = vpop.permute.xlu0 %274
          %278 = vset.pattern.permute.xlu0 0
          %279 = vperm.xlu0 %278, %v257
          %v280 = vpop.permute.xlu0 %279
          %283 = vset.pattern.permute.xlu0 0
          %284 = vperm.xlu0 %283, %v258
          %v285 = vpop.permute.xlu0 %284
          %288 = vset.pattern.permute.xlu0 0
          %289 = vperm.xlu0 %288, %v259
          %v290 = vpop.permute.xlu0 %289
          %293 = vset.pattern.permute.xlu0 0
          %294 = vperm.xlu0 %293, %v260
          %v295 = vpop.permute.xlu0 %294
          %298 = vset.pattern.permute.xlu0 0
          %299 = vperm.xlu0 %298, %v261
          %v300 = vpop.permute.xlu0 %299
          %v310 = vunpack.c.l.b16 %v246
          %v311 = vunpack.c.l.b16 %v247
          %v312 = vunpack.c.l.b16 %v248
          %v313 = vunpack.c.l.b16 %v249
          %v314 = vunpack.c.l.b16 %v250
          %v315 = vunpack.c.l.b16 %v251
          %v316 = vunpack.c.l.b16 %v252
          %v317 = vunpack.c.l.b16 %v253
          %v318 = vpack.c.b16 %v311, %v310
          %v319 = vpack.c.b16 %v313, %v312
          %v320 = vpack.c.b16 %v315, %v314
          %v321 = vpack.c.b16 %v317, %v316
          %vm322 = vcmask 261120
          %v324 = vsel %vm322, %v318, 0
          %v327 = vsel %vm322, %v319, 0
          %v330 = vsel %vm322, %v320, 0
          %v333 = vsel %vm322, %v321, 0
          %335 = vmatprep.subr.bf16.mxu0 %v243
          %336 = vmatpush1.bf16.msra.mxu0 %v242
          %337 = vmatprep.subr.bf16.mxu0 %v245
          %338 = vmatpush1.bf16.msra.mxu0 %v244
          %339 = vmatprep.subr.bf16.mxu0 0
          %340 = vmatpush1.bf16.msra.mxu0 0
          %341 = vmatprep.subr.bf16.mxu0 0
          %342 = vmatpush1.bf16.msra.mxu0 0
          %343 = vmatprep.subr.bf16.mxu0 0
          %344 = vmatpush1.bf16.msra.mxu0 0
          %345 = vmatprep.subr.bf16.mxu0 0
          %346 = vmatpush1.bf16.msra.mxu0 0
          %347 = vmatprep.subr.bf16.mxu0 0
          %348 = vmatpush1.bf16.msra.mxu0 0
          %349 = vmatprep.subr.bf16.mxu0 0
          %350 = vmatpush1.bf16.msra.mxu0 0
          %351 = vmatprep.subr.bf16.mxu0 0
          %352 = vmatpush1.bf16.msra.mxu0 0
          %353 = vmatprep.subr.bf16.mxu0 0
          %354 = vmatpush1.bf16.msra.mxu0 0
          %355 = vmatprep.subr.bf16.mxu0 0
          %356 = vmatpush1.bf16.msra.mxu0 0
          %357 = vmatprep.subr.bf16.mxu0 0
          %358 = vmatpush1.bf16.msra.mxu0 0
          %359 = vmatprep.subr.bf16.mxu0 0
          %360 = vmatpush1.bf16.msra.mxu0 0
          %361 = vmatprep.subr.bf16.mxu0 0
          %362 = vmatpush1.bf16.msra.mxu0 0
          %363 = vmatprep.subr.bf16.mxu0 0
          %364 = vmatpush1.bf16.msra.mxu0 0
          %365 = vmatprep.subr.bf16.mxu0 0
          %366 = vmatpush1.bf16.msra.mxu0 0
          %367 = vmatprep.mubr.bf16.mxu0 0
          %368 = vmatmul.mubr.bf16.gmra.mrb[0].mxu0 %v324
          %v369 = vpop.f32.mrb[0].mxu0
          %v370 = vadd.f32 %v265, %v369
          %v371 = vpop.f32.mrb[0].mxu0
          %v372 = vadd.f32 %v265, %v371
          %v373 = vpop.f32.mrb[0].mxu0
          %v374 = vadd.f32 %v270, %v373
          %v375 = vpop.f32.mrb[0].mxu0
          %v376 = vadd.f32 %v270, %v375
          %377 = vmatprep.mubr.bf16.mxu0 0
          %378 = vmatmul.mubr.bf16.gmra.mrb[0].mxu0 %v327
          %v379 = vpop.f32.mrb[0].mxu0
          %v380 = vadd.f32 %v275, %v379
          %v381 = vpop.f32.mrb[0].mxu0
          %v382 = vadd.f32 %v275, %v381
          %v383 = vpop.f32.mrb[0].mxu0
          %v384 = vadd.f32 %v280, %v383
          %v385 = vpop.f32.mrb[0].mxu0
          %v386 = vadd.f32 %v280, %v385
          %387 = vmatprep.mubr.bf16.mxu0 0
          %388 = vmatmul.mubr.bf16.gmra.mrb[0].mxu0 %v330
          %v389 = vpop.f32.mrb[0].mxu0
          %v390 = vadd.f32 %v285, %v389
          %v391 = vpop.f32.mrb[0].mxu0
          %v392 = vadd.f32 %v285, %v391
          %v393 = vpop.f32.mrb[0].mxu0
          %v394 = vadd.f32 %v290, %v393
          %v395 = vpop.f32.mrb[0].mxu0
          %v396 = vadd.f32 %v290, %v395
          %397 = vmatprep.mubr.bf16.mxu0 0
          %398 = vmatmul.mubr.bf16.gmra.mrb[0].mxu0 %v333
          %v399 = vpop.f32.mrb[0].mxu0
          %v400 = vadd.f32 %v295, %v399
          %v401 = vpop.f32.mrb[0].mxu0
          %v402 = vadd.f32 %v295, %v401
          %v403 = vpop.f32.mrb[0].mxu0
          %v404 = vadd.f32 %v300, %v403
          %v405 = vpop.f32.mrb[0].mxu0
          %v406 = vadd.f32 %v300, %v405
          %407 = vdwg.mxu0
          %v408 = vpack.c.bf16 %v374, %v370
          %v409 = vpack.c.bf16 %v376, %v372
          %v410 = vpack.c.bf16 %v384, %v380
          %v411 = vpack.c.bf16 %v386, %v382
          %v412 = vpack.c.bf16 %v394, %v390
          %v413 = vpack.c.bf16 %v396, %v392
          %v414 = vpack.c.bf16 %v404, %v400
          %v415 = vpack.c.bf16 %v406, %v402
          %416 = vst [vmem:[#allocation2] sm:$0xff] %v408
          %417 = vst [vmem:[#allocation2 + $0x8] sm:$0xff] %v409
          %418 = vst [vmem:[#allocation2 + $0x10] sm:$0xff] %v410
          %419 = vst [vmem:[#allocation2 + $0x18] sm:$0xff] %v411
          %420 = vst [vmem:[#allocation2 + $0x20] sm:$0xff] %v412
          %421 = vst [vmem:[#allocation2 + $0x28] sm:$0xff] %v413
          %422 = vst [vmem:[#allocation2 + $0x30] sm:$0xff] %v414
          %423 = vst [vmem:[#allocation2 + $0x38] sm:$0xff] %v415
          %424 = vst [vmem:[%s228] sm:$0xff] 0.0
          %425 = vst [vmem:[%s228 + $0x8] sm:$0xff] 0.0
          %426 = vst [vmem:[%s228 + $0x10] sm:$0xff] 0.0
          %427 = vst [vmem:[%s228 + $0x18] sm:$0xff] 0.0
          %428 = vst [vmem:[%s228 + $0x20] sm:$0xff] 0.0
          %429 = vst [vmem:[%s228 + $0x28] sm:$0xff] 0.0
          %430 = vst [vmem:[%s228 + $0x30] sm:$0xff] 0.0
          %431 = vst [vmem:[%s228 + $0x38] sm:$0xff] 0.0
        $region44: #{tpu_custom_call.1} parent=35 // pred_fallthru
          _
        %s432 = smul.u32 %s27, 128
        %v433 = vld [vmem:[#allocation2] sm:$0xff]
        %v434 = vld [vmem:[#allocation2 + $0x8] sm:$0xff]
        %s435 = sshra.s32 %s432, 7
        %s436 = sand.u32 %s432, 127
        %s437 = smul.addr %s435, 8
        %s438 = scalar_lea.vmem [#allocation2], %s437
        %v439 = vld [vmem:[%s438 + $0x10] sm:$0xff]
        %v440 = vld [vmem:[%s438 + $0x20] sm:$0xff]
        %v441 = vld [vmem:[%s438 + $0x30] sm:$0xff]
        %442 = vxpose.xlu0.c.b16.start [1/8] %v439, 128
        %443 = vxpose.xlu0.c.b16.cont [2/8] 0, 128
        %444 = vxpose.xlu0.c.b16.cont [3/8] 0, 128
        %445 = vxpose.xlu0.c.b16.cont [4/8] 0, 128
        %446 = vxpose.xlu0.c.b16.cont [5/8] 0, 128
        %447 = vxpose.xlu0.c.b16.cont [6/8] 0, 128
        %448 = vxpose.xlu0.c.b16.cont [7/8] 0, 128
        %449 = vxpose.xlu0.c.b16.end [8/8] 0, 128
        %v450 = vpop.trf.xlu0
        %v451 = vpop.trf.xlu0
        %v452 = vpop.trf.xlu0
        %v453 = vpop.trf.xlu0
        %v454 = vpop.trf.xlu0
        %v455 = vpop.trf.xlu0
        %v456 = vpop.trf.xlu0
        %v457 = vpop.trf.xlu0
        %vm458 = vcmask 130048
        %v460 = vsel %vm458, %v450, 0
        %v463 = vsel %vm458, %v451, 0
        %v466 = vsel %vm458, %v452, 0
        %v469 = vsel %vm458, %v453, 0
        %v472 = vsel %vm458, %v454, 0
        %v475 = vsel %vm458, %v455, 0
        %v478 = vsel %vm458, %v456, 0
        %v481 = vsel %vm458, %v457, 0
        %483 = vmatprep.subr.bf16.mxu0 %v434
        %484 = vmatpush1.bf16.msra.mxu0 %v433
        %485 = vmatprep.subr.bf16.mxu0 0
        %486 = vmatpush1.bf16.msra.mxu0 0
        %487 = vmatprep.subr.bf16.mxu0 0
        %488 = vmatpush1.bf16.msra.mxu0 0
        %489 = vmatprep.subr.bf16.mxu0 0
        %490 = vmatpush1.bf16.msra.mxu0 0
        %491 = vmatprep.subr.bf16.mxu0 0
        %492 = vmatpush1.bf16.msra.mxu0 0
        %493 = vmatprep.subr.bf16.mxu0 0
        %494 = vmatpush1.bf16.msra.mxu0 0
        %495 = vmatprep.subr.bf16.mxu0 0
        %496 = vmatpush1.bf16.msra.mxu0 0
        %497 = vmatprep.subr.bf16.mxu0 0
        %498 = vmatpush1.bf16.msra.mxu0 0
        %499 = vmatprep.subr.bf16.mxu0 0
        %500 = vmatpush1.bf16.msra.mxu0 0
        %501 = vmatprep.subr.bf16.mxu0 0
        %502 = vmatpush1.bf16.msra.mxu0 0
        %503 = vmatprep.subr.bf16.mxu0 0
        %504 = vmatpush1.bf16.msra.mxu0 0
        %505 = vmatprep.subr.bf16.mxu0 0
        %506 = vmatpush1.bf16.msra.mxu0 0
        %507 = vmatprep.subr.bf16.mxu0 0
        %508 = vmatpush1.bf16.msra.mxu0 0
        %509 = vmatprep.subr.bf16.mxu0 0
        %510 = vmatpush1.bf16.msra.mxu0 0
        %511 = vmatprep.subr.bf16.mxu0 0
        %512 = vmatpush1.bf16.msra.mxu0 0
        %513 = vmatprep.subr.bf16.mxu0 0
        %514 = vmatpush1.bf16.msra.mxu0 0
        %515 = vmatprep.mubr.bf16.mxu0 0
        %516 = vmatmul.mubr.bf16.gmra.mrb[0].mxu0 %v460
        %v517 = vpop.f32.mrb[0].mxu0
        %v518 = vadd.f32 0.0, %v517
        %v519 = vpop.f32.mrb[0].mxu0
        %v520 = vadd.f32 0.0, %v519
        %v521 = vpop.f32.mrb[0].mxu0
        %v522 = vadd.f32 0.0, %v521
        %v523 = vpop.f32.mrb[0].mxu0
        %v524 = vadd.f32 0.0, %v523
        %525 = vmatprep.mubr.bf16.mxu0 0
        %526 = vmatmul.mubr.bf16.gmra.mrb[0].mxu0 %v463
        %v527 = vpop.f32.mrb[0].mxu0
        %v528 = vadd.f32 0.0, %v527
        %v529 = vpop.f32.mrb[0].mxu0
        %v530 = vadd.f32 0.0, %v529
        %v531 = vpop.f32.mrb[0].mxu0
        %v532 = vadd.f32 0.0, %v531
        %v533 = vpop.f32.mrb[0].mxu0
        %v534 = vadd.f32 0.0, %v533
        %535 = vmatprep.mubr.bf16.mxu0 0
        %536 = vmatmul.mubr.bf16.gmra.mrb[0].mxu0 %v466
        %v537 = vpop.f32.mrb[0].mxu0
        %v538 = vadd.f32 0.0, %v537
        %v539 = vpop.f32.mrb[0].mxu0
        %v540 = vadd.f32 0.0, %v539
        %v541 = vpop.f32.mrb[0].mxu0
        %v542 = vadd.f32 0.0, %v541
        %v543 = vpop.f32.mrb[0].mxu0
        %v544 = vadd.f32 0.0, %v543
        %545 = vmatprep.mubr.bf16.mxu0 0
        %546 = vmatmul.mubr.bf16.gmra.mrb[0].mxu0 %v469
        %v547 = vpop.f32.mrb[0].mxu0
        %v548 = vadd.f32 0.0, %v547
        %v549 = vpop.f32.mrb[0].mxu0
        %v550 = vadd.f32 0.0, %v549
        %v551 = vpop.f32.mrb[0].mxu0
        %v552 = vadd.f32 0.0, %v551
        %v553 = vpop.f32.mrb[0].mxu0
        %v554 = vadd.f32 0.0, %v553
        %555 = vmatprep.mubr.bf16.mxu0 0
        %556 = vmatmul.mubr.bf16.gmra.mrb[0].mxu0 %v472
        %v557 = vpop.f32.mrb[0].mxu0
        %v558 = vadd.f32 0.0, %v557
        %v559 = vpop.f32.mrb[0].mxu0
        %v560 = vadd.f32 0.0, %v559
        %v561 = vpop.f32.mrb[0].mxu0
        %v562 = vadd.f32 0.0, %v561
        %v563 = vpop.f32.mrb[0].mxu0
        %v564 = vadd.f32 0.0, %v563
        %565 = vmatprep.mubr.bf16.mxu0 0
        %566 = vmatmul.mubr.bf16.gmra.mrb[0].mxu0 %v475
        %v567 = vpop.f32.mrb[0].mxu0
        %v568 = vadd.f32 0.0, %v567
        %v569 = vpop.f32.mrb[0].mxu0
        %v570 = vadd.f32 0.0, %v569
        %v571 = vpop.f32.mrb[0].mxu0
        %v572 = vadd.f32 0.0, %v571
        %v573 = vpop.f32.mrb[0].mxu0
        %v574 = vadd.f32 0.0, %v573
        %575 = vmatprep.mubr.bf16.mxu0 0
        %576 = vmatmul.mubr.bf16.gmra.mrb[0].mxu0 %v478
        %v577 = vpop.f32.mrb[0].mxu0
        %v578 = vadd.f32 0.0, %v577
        %v579 = vpop.f32.mrb[0].mxu0
        %v580 = vadd.f32 0.0, %v579
        %v581 = vpop.f32.mrb[0].mxu0
        %v582 = vadd.f32 0.0, %v581
        %v583 = vpop.f32.mrb[0].mxu0
        %v584 = vadd.f32 0.0, %v583
        %585 = vmatprep.mubr.bf16.mxu0 0
        %586 = vmatmul.mubr.bf16.gmra.mrb[0].mxu0 %v481
        %v587 = vpop.f32.mrb[0].mxu0
        %v588 = vadd.f32 0.0, %v587
        %v589 = vpop.f32.mrb[0].mxu0
        %v590 = vadd.f32 0.0, %v589
        %v591 = vpop.f32.mrb[0].mxu0
        %v592 = vadd.f32 0.0, %v591
        %v593 = vpop.f32.mrb[0].mxu0
        %v594 = vadd.f32 0.0, %v593
        %595 = vdwg.mxu0
        %v596 = vmax.f32 %v518, %v520
        %597 = vmax.xlane.f32.xlu0 %v596
        %v598 = vpop.xlane.xlu0 %597
        %v599 = vmax.f32 %v522, %v524
        %600 = vmax.xlane.f32.xlu0 %v599
        %v601 = vpop.xlane.xlu0 %600
        %v602 = vmax.f32 %v528, %v530
        %603 = vmax.xlane.f32.xlu0 %v602
        %v604 = vpop.xlane.xlu0 %603
        %v605 = vmax.f32 %v532, %v534
        %606 = vmax.xlane.f32.xlu0 %v605
        %v607 = vpop.xlane.xlu0 %606
        %v608 = vmax.f32 %v538, %v540
        %609 = vmax.xlane.f32.xlu0 %v608
        %v610 = vpop.xlane.xlu0 %609
        %v611 = vmax.f32 %v542, %v544
        %612 = vmax.xlane.f32.xlu0 %v611
        %v613 = vpop.xlane.xlu0 %612
        %v614 = vmax.f32 %v548, %v550
        %615 = vmax.xlane.f32.xlu0 %v614
        %v616 = vpop.xlane.xlu0 %615
        %v617 = vmax.f32 %v552, %v554
        %618 = vmax.xlane.f32.xlu0 %v617
        %v619 = vpop.xlane.xlu0 %618
        %v620 = vmax.f32 %v558, %v560
        %621 = vmax.xlane.f32.xlu0 %v620
        %v622 = vpop.xlane.xlu0 %621
        %v623 = vmax.f32 %v562, %v564
        %624 = vmax.xlane.f32.xlu0 %v623
        %v625 = vpop.xlane.xlu0 %624
        %v626 = vmax.f32 %v568, %v570
        %627 = vmax.xlane.f32.xlu0 %v626
        %v628 = vpop.xlane.xlu0 %627
        %v629 = vmax.f32 %v572, %v574
        %630 = vmax.xlane.f32.xlu0 %v629
        %v631 = vpop.xlane.xlu0 %630
        %v632 = vmax.f32 %v578, %v580
        %633 = vmax.xlane.f32.xlu0 %v632
        %v634 = vpop.xlane.xlu0 %633
        %v635 = vmax.f32 %v582, %v584
        %636 = vmax.xlane.f32.xlu0 %v635
        %v637 = vpop.xlane.xlu0 %636
        %v638 = vmax.f32 %v588, %v590
        %639 = vmax.xlane.f32.xlu0 %v638
        %v640 = vpop.xlane.xlu0 %639
        %v641 = vmax.f32 %v592, %v594
        %642 = vmax.xlane.f32.xlu0 %v641
        %v643 = vpop.xlane.xlu0 %642
        %v644 = vsub.f32 %v518, %v598
        %v645 = vsub.f32 %v520, %v598
        %v646 = vsub.f32 %v522, %v601
        %v647 = vsub.f32 %v524, %v601
        %v648 = vsub.f32 %v528, %v604
        %v649 = vsub.f32 %v530, %v604
        %v650 = vsub.f32 %v532, %v607
        %v651 = vsub.f32 %v534, %v607
        %v652 = vsub.f32 %v538, %v610
        %v653 = vsub.f32 %v540, %v610
        %v654 = vsub.f32 %v542, %v613
        %v655 = vsub.f32 %v544, %v613
        %v656 = vsub.f32 %v548, %v616
        %v657 = vsub.f32 %v550, %v616
        %v658 = vsub.f32 %v552, %v619
        %v659 = vsub.f32 %v554, %v619
        %v660 = vsub.f32 %v558, %v622
        %v661 = vsub.f32 %v560, %v622
        %v662 = vsub.f32 %v562, %v625
        %v663 = vsub.f32 %v564, %v625
        %v664 = vsub.f32 %v568, %v628
        %v665 = vsub.f32 %v570, %v628
        %v666 = vsub.f32 %v572, %v631
        %v667 = vsub.f32 %v574, %v631
        %v668 = vsub.f32 %v578, %v634
        %v669 = vsub.f32 %v580, %v634
        %v670 = vsub.f32 %v582, %v637
        %v671 = vsub.f32 %v584, %v637
        %v672 = vsub.f32 %v588, %v640
        %v673 = vsub.f32 %v590, %v640
        %v674 = vsub.f32 %v592, %v643
        %v675 = vsub.f32 %v594, %v643
        %v676 = vmul.f32 %v644, 1.442695
        %v677 = vpow.pop %v676
        %v678 = vmul.f32 %v645, 1.442695
        %v679 = vpow.pop %v678
        %v680 = vmul.f32 %v646, 1.442695
        %v681 = vpow.pop %v680
        %v682 = vmul.f32 %v647, 1.442695
        %v683 = vpow.pop %v682
        %v684 = vmul.f32 %v648, 1.442695
        %v685 = vpow.pop %v684
        %v686 = vmul.f32 %v649, 1.442695
        %v687 = vpow.pop %v686
        %v688 = vmul.f32 %v650, 1.442695
        %v689 = vpow.pop %v688
        %v690 = vmul.f32 %v651, 1.442695
        %v691 = vpow.pop %v690
        %v692 = vmul.f32 %v652, 1.442695
        %v693 = vpow.pop %v692
        %v694 = vmul.f32 %v653, 1.442695
        %v695 = vpow.pop %v694
        %v696 = vmul.f32 %v654, 1.442695
        %v697 = vpow.pop %v696
        %v698 = vmul.f32 %v655, 1.442695
        %v699 = vpow.pop %v698
        %v700 = vmul.f32 %v656, 1.442695
        %v701 = vpow.pop %v700
        %v702 = vmul.f32 %v657, 1.442695
        %v703 = vpow.pop %v702
        %v704 = vmul.f32 %v658, 1.442695
        %v705 = vpow.pop %v704
        %v706 = vmul.f32 %v659, 1.442695
        %v707 = vpow.pop %v706
        %v708 = vmul.f32 %v660, 1.442695
        %v709 = vpow.pop %v708
        %v710 = vmul.f32 %v661, 1.442695
        %v711 = vpow.pop %v710
        %v712 = vmul.f32 %v662, 1.442695
        %v713 = vpow.pop %v712
        %v714 = vmul.f32 %v663, 1.442695
        %v715 = vpow.pop %v714
        %v716 = vmul.f32 %v664, 1.442695
        %v717 = vpow.pop %v716
        %v718 = vmul.f32 %v665, 1.442695
        %v719 = vpow.pop %v718
        %v720 = vmul.f32 %v666, 1.442695
        %v721 = vpow.pop %v720
        %v722 = vmul.f32 %v667, 1.442695
        %v723 = vpow.pop %v722
        %v724 = vmul.f32 %v668, 1.442695
        %v725 = vpow.pop %v724
        %v726 = vmul.f32 %v669, 1.442695
        %v727 = vpow.pop %v726
        %v728 = vmul.f32 %v670, 1.442695
        %v729 = vpow.pop %v728
        %v730 = vmul.f32 %v671, 1.442695
        %v731 = vpow.pop %v730
        %v732 = vmul.f32 %v672, 1.442695
        %v733 = vpow.pop %v732
        %v734 = vmul.f32 %v673, 1.442695
        %v735 = vpow.pop %v734
        %v736 = vmul.f32 %v674, 1.442695
        %v737 = vpow.pop %v736
        %v738 = vmul.f32 %v675, 1.442695
        %v739 = vpow.pop %v738
        %v740 = vadd.f32 %v677, %v679
        %741 = vadd.xlane.f32.xlu0 %v740
        %v742 = vpop.xlane.xlu0 %741
        %v743 = vadd.f32 %v681, %v683
        %744 = vadd.xlane.f32.xlu0 %v743
        %v745 = vpop.xlane.xlu0 %744
        %v746 = vadd.f32 %v685, %v687
        %747 = vadd.xlane.f32.xlu0 %v746
        %v748 = vpop.xlane.xlu0 %747
        %v749 = vadd.f32 %v689, %v691
        %750 = vadd.xlane.f32.xlu0 %v749
        %v751 = vpop.xlane.xlu0 %750
        %v752 = vadd.f32 %v693, %v695
        %753 = vadd.xlane.f32.xlu0 %v752
        %v754 = vpop.xlane.xlu0 %753
        %v755 = vadd.f32 %v697, %v699
        %756 = vadd.xlane.f32.xlu0 %v755
        %v757 = vpop.xlane.xlu0 %756
        %v758 = vadd.f32 %v701, %v703
        %759 = vadd.xlane.f32.xlu0 %v758
        %v760 = vpop.xlane.xlu0 %759
        %v761 = vadd.f32 %v705, %v707
        %762 = vadd.xlane.f32.xlu0 %v761
        %v763 = vpop.xlane.xlu0 %762
        %v764 = vadd.f32 %v709, %v711
        %765 = vadd.xlane.f32.xlu0 %v764
        %v766 = vpop.xlane.xlu0 %765
        %v767 = vadd.f32 %v713, %v715
        %768 = vadd.xlane.f32.xlu0 %v767
        %v769 = vpop.xlane.xlu0 %768
        %v770 = vadd.f32 %v717, %v719
        %771 = vadd.xlane.f32.xlu0 %v770
        %v772 = vpop.xlane.xlu0 %771
        %v773 = vadd.f32 %v721, %v723
        %774 = vadd.xlane.f32.xlu0 %v773
        %v775 = vpop.xlane.xlu0 %774
        %v776 = vadd.f32 %v725, %v727
        %777 = vadd.xlane.f32.xlu0 %v776
        %v778 = vpop.xlane.xlu0 %777
        %v779 = vadd.f32 %v729, %v731
        %780 = vadd.xlane.f32.xlu0 %v779
        %v781 = vpop.xlane.xlu0 %780
        %v782 = vadd.f32 %v733, %v735
        %783 = vadd.xlane.f32.xlu0 %v782
        %v784 = vpop.xlane.xlu0 %783
        %v785 = vadd.f32 %v737, %v739
        %786 = vadd.xlane.f32.xlu0 %v785
        %v787 = vpop.xlane.xlu0 %786
        %v788 = vrcp.pop %v742
        %v789 = vrcp.pop %v745
        %v790 = vrcp.pop %v748
        %v791 = vrcp.pop %v751
        %v792 = vrcp.pop %v754
        %v793 = vrcp.pop %v757
        %v794 = vrcp.pop %v760
        %v795 = vrcp.pop %v763
        %v796 = vrcp.pop %v766
        %v797 = vrcp.pop %v769
        %v798 = vrcp.pop %v772
        %v799 = vrcp.pop %v775
        %v800 = vrcp.pop %v778
        %v801 = vrcp.pop %v781
        %v802 = vrcp.pop %v784
        %v803 = vrcp.pop %v787
        %v804 = vmul.f32 %v677, %v788
        %v805 = vmul.f32 %v679, %v788
        %v806 = vmul.f32 %v681, %v789
        %v807 = vmul.f32 %v683, %v789
        %v808 = vmul.f32 %v685, %v790
        %v809 = vmul.f32 %v687, %v790
        %v810 = vmul.f32 %v689, %v791
        %v811 = vmul.f32 %v691, %v791
        %v812 = vmul.f32 %v693, %v792
        %v813 = vmul.f32 %v695, %v792
        %v814 = vmul.f32 %v697, %v793
        %v815 = vmul.f32 %v699, %v793
        %v816 = vmul.f32 %v701, %v794
        %v817 = vmul.f32 %v703, %v794
        %v818 = vmul.f32 %v705, %v795
        %v819 = vmul.f32 %v707, %v795
        %v820 = vmul.f32 %v709, %v796
        %v821 = vmul.f32 %v711, %v796
        %v822 = vmul.f32 %v713, %v797
        %v823 = vmul.f32 %v715, %v797
        %v824 = vmul.f32 %v717, %v798
        %v825 = vmul.f32 %v719, %v798
        %v826 = vmul.f32 %v721, %v799
        %v827 = vmul.f32 %v723, %v799
        %v828 = vmul.f32 %v725, %v800
        %v829 = vmul.f32 %v727, %v800
        %v830 = vmul.f32 %v729, %v801
        %v831 = vmul.f32 %v731, %v801
        %v832 = vmul.f32 %v733, %v802
        %v833 = vmul.f32 %v735, %v802
        %v834 = vmul.f32 %v737, %v803
        %v835 = vmul.f32 %v739, %v803
        %v836 = vld [vmem:[%s228] sm:$0xff]
        %v837 = vld [vmem:[%s228 + $0x8] sm:$0xff]
        %v838 = vld [vmem:[%s228 + $0x10] sm:$0xff]
        %v839 = vld [vmem:[%s228 + $0x18] sm:$0xff]
        %v840 = vld [vmem:[%s228 + $0x20] sm:$0xff]
        %v841 = vld [vmem:[%s228 + $0x28] sm:$0xff]
        %v842 = vld [vmem:[%s228 + $0x30] sm:$0xff]
        %v843 = vld [vmem:[%s228 + $0x38] sm:$0xff]
        %v844 = vpack.c.bf16 %v806, %v804
        %v845 = vpack.c.bf16 %v807, %v805
        %v846 = vpack.c.bf16 %v810, %v808
        %v847 = vpack.c.bf16 %v811, %v809
        %v848 = vpack.c.bf16 %v814, %v812
        %v849 = vpack.c.bf16 %v815, %v813
        %v850 = vpack.c.bf16 %v818, %v816
        %v851 = vpack.c.bf16 %v819, %v817
        %v852 = vpack.c.bf16 %v822, %v820
        %v853 = vpack.c.bf16 %v823, %v821
        %v854 = vpack.c.bf16 %v826, %v824
        %v855 = vpack.c.bf16 %v827, %v825
        %v856 = vpack.c.bf16 %v830, %v828
        %v857 = vpack.c.bf16 %v831, %v829
        %v858 = vpack.c.bf16 %v834, %v832
        %v859 = vpack.c.bf16 %v835, %v833
        %860 = vmatprep.subr.bf16.mxu0 %v845
        %861 = vmatpush1.bf16.msra.mxu0 %v844
        %862 = vmatprep.subr.bf16.mxu0 %v847
        %863 = vmatpush1.bf16.msra.mxu0 %v846
        %864 = vmatprep.subr.bf16.mxu0 %v849
        %865 = vmatpush1.bf16.msra.mxu0 %v848
        %866 = vmatprep.subr.bf16.mxu0 %v851
        %867 = vmatpush1.bf16.msra.mxu0 %v850
        %868 = vmatprep.subr.bf16.mxu0 %v853
        %869 = vmatpush1.bf16.msra.mxu0 %v852
        %870 = vmatprep.subr.bf16.mxu0 %v855
        %871 = vmatpush1.bf16.msra.mxu0 %v854
        %872 = vmatprep.subr.bf16.mxu0 %v857
        %873 = vmatpush1.bf16.msra.mxu0 %v856
        %874 = vmatprep.subr.bf16.mxu0 %v859
        %875 = vmatpush1.bf16.msra.mxu0 %v858
        %876 = vmatprep.subr.bf16.mxu0 0
        %877 = vmatpush1.bf16.msra.mxu0 0
        %878 = vmatprep.subr.bf16.mxu0 0
        %879 = vmatpush1.bf16.msra.mxu0 0
        %880 = vmatprep.subr.bf16.mxu0 0
        %881 = vmatpush1.bf16.msra.mxu0 0
        %882 = vmatprep.subr.bf16.mxu0 0
        %883 = vmatpush1.bf16.msra.mxu0 0
        %884 = vmatprep.subr.bf16.mxu0 0
        %885 = vmatpush1.bf16.msra.mxu0 0
        %886 = vmatprep.subr.bf16.mxu0 0
        %887 = vmatpush1.bf16.msra.mxu0 0
        %888 = vmatprep.subr.bf16.mxu0 0
        %889 = vmatpush1.bf16.msra.mxu0 0
        %890 = vmatprep.subr.bf16.mxu0 0
        %891 = vmatpush1.bf16.msra.mxu0 0
        %892 = vmatprep.mubr.bf16.mxu0 0
        %893 = vmatmul.mubr.bf16.gmra.mrb[0].mxu0 %v440
        %v894 = vpop.f32.mrb[0].mxu0
        %v895 = vadd.f32 0.0, %v894
        %v896 = vpop.f32.mrb[0].mxu0
        %v897 = vadd.f32 0.0, %v896
        %v898 = vpop.f32.mrb[0].mxu0
        %v899 = vadd.f32 0.0, %v898
        %v900 = vpop.f32.mrb[0].mxu0
        %v901 = vadd.f32 0.0, %v900
        %902 = vmatprep.mubr.bf16.mxu0 0
        %903 = vmatmul.mubr.bf16.gmra.mrb[0].mxu0 %v441
        %v904 = vpop.f32.mrb[0].mxu0
        %v905 = vadd.f32 0.0, %v904
        %v906 = vpop.f32.mrb[0].mxu0
        %v907 = vadd.f32 0.0, %v906
        %v908 = vpop.f32.mrb[0].mxu0
        %v909 = vadd.f32 0.0, %v908
        %v910 = vpop.f32.mrb[0].mxu0
        %v911 = vadd.f32 0.0, %v910
        %912 = vdwg.mxu0
        %v913 = vadd.f32 %v836, %v895
        %v914 = vadd.f32 %v837, %v897
        %v915 = vadd.f32 %v838, %v899
        %v916 = vadd.f32 %v839, %v901
        %v917 = vadd.f32 %v840, %v905
        %v918 = vadd.f32 %v841, %v907
        %v919 = vadd.f32 %v842, %v909
        %v920 = vadd.f32 %v843, %v911
        %921 = vst [vmem:[%s228] sm:$0xff] %v913
        %922 = vst [vmem:[%s228 + $0x8] sm:$0xff] %v914
        %923 = vst [vmem:[%s228 + $0x10] sm:$0xff] %v915
        %924 = vst [vmem:[%s228 + $0x18] sm:$0xff] %v916
        %925 = vst [vmem:[%s228 + $0x20] sm:$0xff] %v917
        %926 = vst [vmem:[%s228 + $0x28] sm:$0xff] %v918
        %927 = vst [vmem:[%s228 + $0x30] sm:$0xff] %v919
        %928 = vst [vmem:[%s228 + $0x38] sm:$0xff] %v920
        %p929 = scmp.eq.s32.totalorder %s27, 1
        // Predicated region
        $region45: #{tpu_custom_call.1} parent=35 // pred_check
          %p930 = pneg %p929
        $region46: #{tpu_custom_call.1} parent=35 // pred_check_branch
          %932 = sbr.rel (%p930) target = $region48
        $region47: #{tpu_custom_call.1} parent=35 // pred_region
          %v933 = vld [vmem:[%s204] sm:$0xff]
          %v934 = vld [vmem:[%s204 + $0x8] sm:$0xff]
          %v935 = vld [vmem:[%s204 + $0x10] sm:$0xff]
          %v936 = vld [vmem:[%s204 + $0x18] sm:$0xff]
          %v937 = vld [vmem:[%s204 + $0x20] sm:$0xff]
          %v938 = vld [vmem:[%s204 + $0x28] sm:$0xff]
          %v939 = vld [vmem:[%s204 + $0x30] sm:$0xff]
          %v940 = vld [vmem:[%s204 + $0x38] sm:$0xff]
          %s941 = sld [smem:[#allocation3]]
          %v942 = vld [vmem:[%s228] sm:$0xff]
          %v943 = vld [vmem:[%s228 + $0x8] sm:$0xff]
          %v944 = vld [vmem:[%s228 + $0x10] sm:$0xff]
          %v945 = vld [vmem:[%s228 + $0x18] sm:$0xff]
          %v946 = vld [vmem:[%s228 + $0x20] sm:$0xff]
          %v947 = vld [vmem:[%s228 + $0x28] sm:$0xff]
          %v948 = vld [vmem:[%s228 + $0x30] sm:$0xff]
          %v949 = vld [vmem:[%s228 + $0x38] sm:$0xff]
          %v950 = vstv %s941
          %v951 = vmul.f32 %v950, %v942
          %v952 = vmul.f32 %v950, %v943
          %v953 = vmul.f32 %v950, %v944
          %v954 = vmul.f32 %v950, %v945
          %v955 = vmul.f32 %v950, %v946
          %v956 = vmul.f32 %v950, %v947
          %v957 = vmul.f32 %v950, %v948
          %v958 = vmul.f32 %v950, %v949
          %v959 = vadd.f32 %v933, %v951
          %v960 = vadd.f32 %v934, %v952
          %v961 = vadd.f32 %v935, %v953
          %v962 = vadd.f32 %v936, %v954
          %v963 = vadd.f32 %v937, %v955
          %v964 = vadd.f32 %v938, %v956
          %v965 = vadd.f32 %v939, %v957
          %v966 = vadd.f32 %v940, %v958
          %967 = vst [vmem:[%s228] sm:$0xff] %v959
          %968 = vst [vmem:[%s228 + $0x8] sm:$0xff] %v960
          %969 = vst [vmem:[%s228 + $0x10] sm:$0xff] %v961
          %970 = vst [vmem:[%s228 + $0x18] sm:$0xff] %v962
          %971 = vst [vmem:[%s228 + $0x20] sm:$0xff] %v963
          %972 = vst [vmem:[%s228 + $0x28] sm:$0xff] %v964
          %973 = vst [vmem:[%s228 + $0x30] sm:$0xff] %v965
          %974 = vst [vmem:[%s228 + $0x38] sm:$0xff] %v966
        $region48: #{tpu_custom_call.1} parent=35 // pred_fallthru
          _
        %s975 = sand.u32 %s131, 1
        %s976 = scalar_lea.sflag [#allocation6], %s975
        %s977 = sand.u32 %s131, 1
        %s978 = smul.addr %s977, 64
        %s979 = scalar_lea.vmem [#allocation7], %s978
        // Predicated region
        $region49: #{tpu_custom_call.1} parent=35 // pred_check
          %p980 = pneg %p141
        $region50: #{tpu_custom_call.1} parent=35 // pred_check_branch
          %982 = sbr.rel (%p980) target = $region52
        $region51: #{tpu_custom_call.1} parent=35 // pred_region
          %s984 = ssub.s32 1024, 1024
          %985 = vsyncadd %s976, %s984
          %s986 = smul.addr %s26, 8
          %s987 = smul.addr %s986, 128
          %s988 = scalar_lea.hbm %s4, %s987
          %s989 = sshll.u32 %s979, 4
          %s990 = int_to_ptr.vmem [resolvable:$true] %s989
          %995 = dma.vmem_to_hbm [thread:$0]  %s990, 1024, %s988, %s976, 256, 256, 16
        $region52: #{tpu_custom_call.1} parent=35 // pred_fallthru
          _
      $region36: #{tpu_custom_call.1} parent=5 // pred_fallthru
        _
      %p996 = scmp.le.s32.totalorder 2, %s17
      // Predicated region
      $region53: #{tpu_custom_call.1} parent=5 // pred_check
        %p997 = pneg %p996
      $region54: #{tpu_custom_call.1} parent=5 // pred_check_branch
        %999 = sbr.rel (%p997) target = $region56
      $region55: #{tpu_custom_call.1} parent=5 // pred_region
        %s1000 = ssub.s32 %s17, 2
        // Predicated region
        $region57: #{tpu_custom_call.1} parent=55 // pred_check
          %p1001 = pneg %p147
        $region58: #{tpu_custom_call.1} parent=55 // pred_check_branch
          %1003 = sbr.rel (%p1001) target = $region60
        $region59: #{tpu_custom_call.1} parent=55 // pred_region
          %s1004 = sand.u32 %s132, 1
          %s1005 = scalar_lea.sflag [#allocation6], %s1004
          %s1006 = sand.u32 %s132, 1
          %s1007 = smul.addr %s1006, 64
          %s1008 = scalar_lea.vmem [#allocation7], %s1007
          %1009 = dma.done %s1005, 1024
        $region60: #{tpu_custom_call.1} parent=55 // pred_fallthru
          _
      $region56: #{tpu_custom_call.1} parent=5 // pred_fallthru
        _
    $region6: #{tpu_custom_call.1} parent=1 // loop_footer
      %s21 = sadd.s32 1, %s17
    $region7: #{tpu_custom_call.1} parent=1 // loop_footer_branch
      %16 = sbr.rel target = $region3
    $region8: #{tpu_custom_call.1} parent=1 // loop_exit
      _
    %1010 = vsyncpa [#allocation5], 1
    %s1011 = scalar_lea.sflag [#allocation5], 1
    %1012 = vsyncpa %s1011, 1
    %1013 = vsyncpa [#allocation6], 1
    %s1014 = scalar_lea.sflag [#allocation6], 1
    %1015 = vsyncpa %s1014, 1

</llo_original>
